<compile_context>
chip_gen: v5e
topology: v5e:2x2
jax: 0.10.0
libtpu: 0.0.40
codegen_flags: <defaults>
</compile_context>

<pallas_src>
import jax
import jax.numpy as jnp
from jax.experimental import pallas as pl
from jax.experimental.pallas import tpu as pltpu


def _encoder_metadata_kernel(p_ref, w_ref, o_ref):
    # p_ref: (B*L_out, K*C_in + 1)  im2col patches for the whole batch,
    #                               last column is ones (bias fold)
    # w_ref: (K*C_in + 1, F)        conv weight rows + bias row
    # o_ref: (B, F)                 pooled output
    B, F = o_ref.shape
    BL = p_ref.shape[0]
    L_out = BL // B

    # One MXU push for the entire batch (bias included via the ones column).
    acc = jnp.dot(p_ref[...], w_ref[...],
                  preferred_element_type=jnp.float32)          # (B*L_out, F)

    # Per-batch global max-pool via static sublane slices (B is tiny & static),
    # then ReLU once on the (B, F) slab.  max-then-relu == relu-then-max here
    # because ReLU is monotone and the bias is constant over L_out.
    rows = [
        jnp.max(acc[b * L_out:(b + 1) * L_out, :], axis=0, keepdims=True)
        for b in range(B)
    ]
    m = jnp.concatenate(rows, axis=0)                           # (B, F)
    o_ref[...] = jnp.maximum(m, 0.0).astype(o_ref.dtype)


def encoder_metadata_forward(metadata, weight, bias):
    """metadata: (B, L, C_in); weight: (F, C_in, K); bias: (F,) -> (B, F)."""
    B, L, C_in = metadata.shape
    F, C_in_w, K = weight.shape
    assert C_in_w == C_in, "weight in_channels must match metadata channels"
    assert L >= K, "sequence length must be >= kernel size (valid conv)"
    L_out = L - K + 1

    x = metadata.astype(jnp.float32)

    # im2col in the wrapper (layout plumbing only):
    #   patches[b*L_out + l, k*C_in + c] = metadata[b, l + k, c]
    cols = jnp.concatenate(
        [x[:, k:k + L_out, :] for k in range(K)], axis=-1)      # (B, L_out, K*C_in)
    patches = cols.reshape(B * L_out, K * C_in)
    # Append a ones column so the bias rides along in the single matmul.
    patches = jnp.concatenate(
        [patches, jnp.ones((B * L_out, 1), jnp.float32)], axis=-1)  # (B*L_out, K*C_in+1)

    # Re-pack the conv weight tap-major and flatten, then append the bias row:
    #   w_aug[k*C_in + c, f] = weight[f, c, k];  w_aug[K*C_in, f] = bias[f]
    w2d = jnp.transpose(weight, (2, 1, 0)).reshape(K * C_in, F).astype(jnp.float32)
    w_aug = jnp.concatenate([w2d, bias.reshape(1, F).astype(jnp.float32)], axis=0)

    flops = 2 * (B * L_out) * (K * C_in + 1) * F
    bytes_accessed = (patches.size + w_aug.size + B * F) * 4

    return pl.pallas_call(
        _encoder_metadata_kernel,
        out_shape=jax.ShapeDtypeStruct((B, F), jnp.float32),
        in_specs=[
            pl.BlockSpec(memory_space=pltpu.MemorySpace.VMEM),
            pl.BlockSpec(memory_space=pltpu.MemorySpace.VMEM),
        ],
        out_specs=pl.BlockSpec(memory_space=pltpu.MemorySpace.VMEM),
        cost_estimate=pl.CostEstimate(
            flops=flops, transcendentals=0, bytes_accessed=bytes_accessed),
    )(patches, w_aug)


if __name__ == "__main__":
    # Small shapes consistent with the module:
    #   oneHotEncoder.getLength() = C_in = 16, number_filters = 32,
    #   kernelSize = 3, batch = 2, sequence length = 8.
    B, L, C_in = 2, 8, 16
    F, K = 32, 3

    key = jax.random.PRNGKey(0)
    k_x, k_w, k_b = jax.random.split(key, 3)

    # Deterministic parameter init (PyTorch-style uniform(-1/sqrt(fan_in), ...)).
    fan_in = C_in * K
    bound = 1.0 / (fan_in ** 0.5)
    weight = jax.random.uniform(k_w, (F, C_in, K), jnp.float32, -bound, bound)
    bias = jax.random.uniform(k_b, (F,), jnp.float32, -bound, bound)

    metadata = jax.random.normal(k_x, (B, L, C_in), jnp.float32)

    out = encoder_metadata_forward(metadata, weight, bias)
    out = jax.block_until_ready(out)

    # Reference check in plain JAX (same math, lax conv).
    x_ncw = jnp.transpose(metadata, (0, 2, 1))                  # (B, C_in, L)
    conv = jax.lax.conv_general_dilated(
        x_ncw, weight, window_strides=(1,), padding="VALID",
        dimension_numbers=("NCH", "OIH", "NCH"))
    conv = conv + bias[None, :, None]
    ref = jnp.max(jnp.maximum(conv, 0.0), axis=2)               # (B, F)
    assert out.shape == (B, F)
    assert jnp.allclose(out, ref, atol=1e-5, rtol=1e-5), "mismatch vs reference"

    print("KERNEL_OK")
</pallas_src>

<mosaic_0001>
module attributes {stable_mosaic.version = 11 : i64} {
  func.func @_encoder_metadata_kernel(%arg0: memref<12x49xf32, #tpu.memory_space<vmem>>, %arg1: memref<49x32xf32, #tpu.memory_space<vmem>>, %arg2: memref<2x32xf32, #tpu.memory_space<vmem>>) attributes {dimension_semantics = [], scalar_prefetch = 0 : i64, scratch_operands = 0 : i64, tpu.core_type = #tpu.core_type<tc>} {
    %c0 = arith.constant 0 : index
    %c0_0 = arith.constant 0 : index
    %0 = vector.load %arg0[%c0, %c0_0] : memref<12x49xf32, #tpu.memory_space<vmem>>, vector<12x49xf32>
    %c0_1 = arith.constant 0 : index
    %c0_2 = arith.constant 0 : index
    %1 = vector.load %arg1[%c0_1, %c0_2] : memref<49x32xf32, #tpu.memory_space<vmem>>, vector<49x32xf32>
    %cst = arith.constant dense<0.000000e+00> : vector<12x32xf32>
    %2 = tpu.matmul %0, %1, %cst {dimension_numbers = #tpu.dot_dimension_numbers<[1], [0], [0], [1], [0, 0, 1, 1], [], []>} : vector<12x49xf32>, vector<49x32xf32>, vector<12x32xf32> -> vector<12x32xf32>
    %3 = vector.extract_strided_slice %2 {offsets = [0, 0], sizes = [6, 32], strides = [1, 1]} : vector<12x32xf32> to vector<6x32xf32>
    %cst_3 = arith.constant dense<0xFF800000> : vector<32xf32>
    %4 = vector.multi_reduction <maximumf>, %3, %cst_3 [0] : vector<6x32xf32> to vector<32xf32>
    %5 = vector.shape_cast %4 : vector<32xf32> to vector<1x32xf32>
    %6 = vector.extract_strided_slice %2 {offsets = [6, 0], sizes = [6, 32], strides = [1, 1]} : vector<12x32xf32> to vector<6x32xf32>
    %cst_4 = arith.constant dense<0xFF800000> : vector<32xf32>
    %7 = vector.multi_reduction <maximumf>, %6, %cst_4 [0] : vector<6x32xf32> to vector<32xf32>
    %8 = vector.shape_cast %7 : vector<32xf32> to vector<1x32xf32>
    %9 = tpu.concatenate %5, %8 in 0 : vector<1x32xf32>, vector<1x32xf32> -> vector<2x32xf32>
    %cst_5 = arith.constant 0.000000e+00 : f32
    %10 = vector.broadcast %cst_5 : f32 to vector<2x32xf32>
    %11 = arith.maximumf %9, %10 : vector<2x32xf32>
    %c0_6 = arith.constant 0 : index
    %c0_7 = arith.constant 0 : index
    %12 = vector.load %arg2[%c0_6, %c0_7] : memref<2x32xf32, #tpu.memory_space<vmem>>, vector<2x32xf32>
    tpu.vector_store %arg2[%c0_6, %c0_7], %11 {strides = array<i32>} : memref<2x32xf32, #tpu.memory_space<vmem>>, vector<2x32xf32>,
    return
  }
}

</mosaic_0001>

<llo_original>
// kernel: tpu_custom_call.1
$region0: #{tpu_custom_call.1}
  #allocation0 [shape = 'u32[]', space=smem, size = 0x4, offset = 0x4, fixed_abs, tag = 'smem constant byte address 0x4 - core index']
  #allocation1 [shape = 'u32[72,128]{1,0:T(1,128)}', space=vmem, size = 0x9000, scoped, tag = 'internal scratch']
  %s0 = inlined_call_operand.vmem [shape: f32[12,49], index: 0, kind: input, shape index: {}]
  %s1 = inlined_call_operand.vmem [shape: f32[49,32], index: 1, kind: input, shape index: {}]
  %s2 = inlined_call_operand.hbm [shape: f32[2,32], index: 2, kind: output, shape index: {}]
  %s3 = sld [smem:[#allocation0]]
  $region18: #{tpu_custom_call.1} parent=0
    _
  %s5 = ssub.s32 1, %s3
  %s6 = scalar_select 0, %s5, %s3
  $region1: #{tpu_custom_call.1} parent=0
    #allocation2 [shape = 'u8[1024]{0}', space=vmem, size = 0x400, scoped, tag = 'output window, operand 0, single buffered']
    #allocation3 [shape = 's32[1]{0}', space=sflag, size = 0x4, scoped, tag = 'scoped memory for tpu_custom_call.1']
    %7 = vsyncpa [#allocation3], 0
    // Predicated region
    $region2: #{tpu_custom_call.1} parent=1 // pred_check
      _
    $region3: #{tpu_custom_call.1} parent=1 // pred_check_branch
      %9 = sbr.rel (0) target = $region5
    $region4: #{tpu_custom_call.1} parent=1 // pred_region
      _
    $region5: #{tpu_custom_call.1} parent=1 // pred_fallthru
      _
    // Predicated region
    $region6: #{tpu_custom_call.1} parent=1 // pred_check
      _
    $region7: #{tpu_custom_call.1} parent=1 // pred_check_branch
      %11 = sbr.rel (0) target = $region9
    $region8: #{tpu_custom_call.1} parent=1 // pred_region
      _
    $region9: #{tpu_custom_call.1} parent=1 // pred_fallthru
      _
    %v12 = vld [vmem:[%s0] sm:$0xff]
    %v13 = vld [vmem:[%s0 + $0x8] sm:$0xf]
    %v14 = vld [vmem:[%s1] sm:$0xff]
    %v15 = vld [vmem:[%s1 + $0x8] sm:$0xff]
    %v16 = vld [vmem:[%s1 + $0x10] sm:$0xff]
    %v17 = vld [vmem:[%s1 + $0x18] sm:$0xff]
    %v18 = vld [vmem:[%s1 + $0x20] sm:$0xff]
    %v19 = vld [vmem:[%s1 + $0x28] sm:$0xff]
    %v20 = vld [vmem:[%s1 + $0x30] sm:$0x1]
    %vm21 = vcmask 400384
    %v23 = vsel %vm21, %v12, 0
    %v26 = vsel %vm21, %v13, 0
    %vm28 = vcmask 1040384
    %v30 = vsel %vm28, %v20, 0
    %32 = vmatpush.msra.mxu0 0.0
    %33 = vmatpush.msra.mxu0 0.0
    %34 = vmatpush.msra.mxu0 0.0
    %35 = vmatpush.msra.mxu0 0.0
    %36 = vmatpush.msra.mxu0 0.0
    %37 = vmatpush.msra.mxu0 0.0
    %38 = vmatpush.msra.mxu0 0.0
    %39 = vmatpush.msra.mxu0 0.0
    %40 = vmatpush.msra.mxu0 0.0
    %41 = vmatpush.msra.mxu0 %v30
    %42 = vmatpush.msra.mxu0 %v19
    %43 = vmatpush.msra.mxu0 %v18
    %44 = vmatpush.msra.mxu0 %v17
    %45 = vmatpush.msra.mxu0 %v16
    %46 = vmatpush.msra.mxu0 %v15
    %47 = vmatpush.msra.mxu0 %v14
    %48 = vmatmul.f32.gmra.mxu0 %v23
    %v49 = vpop.f32.mrf.mxu0
    %v50 = vadd.f32 0.0, %v49
    %51 = vmatmul.f32.gmra.mxu0 %v26
    %v52 = vpop.f32.mrf.mxu0
    %v53 = vadd.f32 0.0, %v52
    %54 = vdwg.mxu0
    %vm55 = vcmask 259072
    %v56 = vsel %vm55, %v50, -inf
    %v57 = vrot.slane %v56, 4
    %v58 = vmax.f32 %v56, %v57
    %v59 = vrot.slane %v58, 2
    %v60 = vmax.f32 %v58, %v59
    %v61 = vrot.slane %v60, 1
    %v62 = vmax.f32 %v60, %v61
    %vm63 = vcmask 261126
    %v64 = vsel %vm63, %v50, -inf
    %vm65 = vcmask 257024
    %v66 = vsel %vm65, %v53, -inf
    %v67 = vmax.f32 %v64, %v66
    %v68 = vrot.slane %v67, 4
    %v69 = vmax.f32 %v67, %v68
    %v70 = vrot.slane %v69, 2
    %v71 = vmax.f32 %v69, %v70
    %v72 = vrot.slane %v71, 1
    %v73 = vmax.f32 %v71, %v72
    %v74 = vsel %vm28, %v62, %v73
    %v75 = vmax.f32 %v74, 0.0
    %vm76 = vcmask 254976
    %77 = vst.msk [vmem:[#allocation2] sm:$0x3] %vm76, %v75
    // Predicated region
    $region10: #{tpu_custom_call.1} parent=1 // pred_check
      _
    $region11: #{tpu_custom_call.1} parent=1 // pred_check_branch
      %79 = sbr.rel (0) target = $region13
    $region12: #{tpu_custom_call.1} parent=1 // pred_region
      %81 = vsyncadd [#allocation3], 0
      %s83 = sshll.u32 [#allocation2], 4
      %s84 = int_to_ptr.vmem [resolvable:$true] %s83
      %s85 = sshll.u32 %s2, 4
      %s86 = int_to_ptr.hbm [resolvable:$true] %s85
      %88 = dma.vmem_to_hbm [thread:$0]  %s84, 32, %s86, [#allocation3]
    $region13: #{tpu_custom_call.1} parent=1 // pred_fallthru
      _
    // Predicated region
    $region14: #{tpu_custom_call.1} parent=1 // pred_check
      _
    $region15: #{tpu_custom_call.1} parent=1 // pred_check_branch
      %90 = sbr.rel (0) target = $region17
    $region16: #{tpu_custom_call.1} parent=1 // pred_region
      %92 = dma.done [#allocation3], 32
    $region17: #{tpu_custom_call.1} parent=1 // pred_fallthru
      _
    %93 = vsyncpa [#allocation3], 1

</llo_original>
